<compile_context>
chip_gen: v6e
topology: v6e:2x2x1
jax: 0.10.0
libtpu: 0.0.40
codegen_flags: <defaults>
</compile_context>

<pallas_src>
import functools

import jax
import jax.numpy as jnp
from jax import lax
from jax.experimental import pallas as pl
from jax.experimental.pallas import tpu as pltpu


N_INFLIGHT = 8  # outstanding row-gather DMAs per grid step


def _round_up(x, m):
    return ((x + m - 1) // m) * m


def _embedding_lnorm_kernel(ids_ref,      # SMEM (M_pad,) int32   (scalar prefetch)
                            emb_hbm_ref,  # ANY  (V, D)           (stays in HBM)
                            gamma_ref,    # VMEM (1, D)
                            beta_ref,     # VMEM (1, D)
                            out_ref,      # VMEM (TM, D)
                            gbuf,         # VMEM scratch (TM, D)  gathered rows
                            sems,         # DMA semaphores (n_inflight,)
                            *, eps, tile_m, n_inflight):
    i = pl.program_id(0)
    base = i * tile_m

    def _issue(r):
        tok = ids_ref[base + r]
        pltpu.make_async_copy(
            emb_hbm_ref.at[pl.ds(tok, 1)],
            gbuf.at[pl.ds(r, 1)],
            sems.at[r % n_inflight],
        ).start()

    def _wait(r):
        # Dummy src slice of the right shape; wait only needs dst/sem/size.
        pltpu.make_async_copy(
            emb_hbm_ref.at[pl.ds(0, 1)],
            gbuf.at[pl.ds(r, 1)],
            sems.at[r % n_inflight],
        ).wait()

    # Prime the pipeline with n_inflight row gathers (static unrolled loop).
    for r in range(n_inflight):
        _issue(r)

    # Wait row r; immediately refill the freed semaphore slot with row r+n_inflight.
    def body(r, carry):
        _wait(r)

        @pl.when(r + n_inflight < tile_m)
        def _():
            _issue(r + n_inflight)

        return carry

    lax.fori_loop(0, tile_m, body, 0)

    # Fused LayerNorm over the gathered (tile_m, D) block, f32 accumulation.
    x = gbuf[...].astype(jnp.float32)
    mean = jnp.mean(x, axis=-1, keepdims=True)
    xc = x - mean
    var = jnp.mean(xc * xc, axis=-1, keepdims=True)
    inv = lax.rsqrt(var + eps)
    y = xc * inv * gamma_ref[...].astype(jnp.float32) + beta_ref[...].astype(jnp.float32)
    out_ref[...] = y.astype(out_ref.dtype)


def embedding_lnorm_forward(ids, emb_table, gamma, beta, *, eps=1e-5, tile_m=128):
    """ids: [btz, seq_len] int -> [btz, seq_len, D]  (embedding lookup + LayerNorm)."""
    btz, seq_len = ids.shape
    vocab_size, d = emb_table.shape

    M = btz * seq_len
    ids_flat = ids.reshape(M).astype(jnp.int32)

    # Token-tile size: big (amortize per-step overhead), multiple of 8 sublanes.
    tm = min(tile_m, _round_up(M, 8))
    n_inflight = min(N_INFLIGHT, tm)

    # Only the tiny int32 id vector is padded; activations never take an extra
    # HBM round-trip.  Padded rows gather row 0 and are discarded afterwards.
    M_pad = pl.cdiv(M, tm) * tm
    if M_pad != M:
        ids_flat = jnp.pad(ids_flat, (0, M_pad - M))

    gamma2d = gamma.reshape(1, d)
    beta2d = beta.reshape(1, d)

    grid = (M_pad // tm,)

    kernel = functools.partial(
        _embedding_lnorm_kernel, eps=eps, tile_m=tm, n_inflight=n_inflight)

    out2d = pl.pallas_call(
        kernel,
        out_shape=jax.ShapeDtypeStruct((M_pad, d), emb_table.dtype),
        grid_spec=pltpu.PrefetchScalarGridSpec(
            num_scalar_prefetch=1,                              # token ids -> SMEM
            grid=grid,
            in_specs=[
                pl.BlockSpec(memory_space=pl.ANY),              # emb table in HBM
                pl.BlockSpec((1, d), lambda i, ids: (0, 0)),    # gamma (constant)
                pl.BlockSpec((1, d), lambda i, ids: (0, 0)),    # beta  (constant)
            ],
            out_specs=pl.BlockSpec((tm, d), lambda i, ids: (i, 0)),
            scratch_shapes=[
                pltpu.VMEM((tm, d), emb_table.dtype),           # gather buffer
                pltpu.SemaphoreType.DMA((n_inflight,)),
            ],
        ),
        compiler_params=pltpu.CompilerParams(
            dimension_semantics=("parallel",)),                 # shards across TCs on v7x
    )(ids_flat, emb_table, gamma2d, beta2d)

    if M_pad != M:
        out2d = out2d[:M]
    return out2d.reshape(btz, seq_len, d)


if __name__ == "__main__":
    # Small shapes consistent with forward(): x [batch_size, seq_len] of token ids.
    btz, seq_len = 2, 128
    vocab_size, embedding_dim = 512, 128   # lane-dense D (multiple of 128)
    pad_id = 0

    key = jax.random.PRNGKey(0)
    k_ids, k_emb, k_g, k_b = jax.random.split(key, 4)

    ids = jax.random.randint(k_ids, (btz, seq_len), 0, vocab_size, dtype=jnp.int32)
    emb_table = jax.random.normal(k_emb, (vocab_size, embedding_dim), jnp.float32)
    # nn.Embedding(padding_idx=pad_id) zero-initializes the pad row; forward is
    # still a plain lookup, so no special handling is needed in the kernel.
    emb_table = emb_table.at[pad_id].set(0.0)
    gamma = 1.0 + 0.1 * jax.random.normal(k_g, (embedding_dim,), jnp.float32)
    beta = 0.1 * jax.random.normal(k_b, (embedding_dim,), jnp.float32)

    out = embedding_lnorm_forward(ids, emb_table, gamma, beta)
    out = jax.block_until_ready(out)

    # Pure-JAX reference: embedding lookup + LayerNorm (eps=1e-5, PyTorch default).
    e = emb_table[ids]
    mean = jnp.mean(e, axis=-1, keepdims=True)
    var = jnp.mean((e - mean) ** 2, axis=-1, keepdims=True)
    ref = (e - mean) / jnp.sqrt(var + 1e-5) * gamma + beta

    assert out.shape == (btz, seq_len, embedding_dim)
    assert jnp.allclose(out, ref, atol=2e-3, rtol=2e-3), float(
        jnp.max(jnp.abs(out - ref)))

    print("KERNEL_OK")
</pallas_src>

<mosaic_0001>
module attributes {stable_mosaic.version = 11 : i64} {
  func.func @_embedding_lnorm_kernel(%arg0: i32, %arg1: memref<256xi32, #tpu.memory_space<smem>>, %arg2: memref<512x128xf32, #tpu.memory_space<any>>, %arg3: memref<1x128xf32, #tpu.memory_space<vmem>>, %arg4: memref<1x128xf32, #tpu.memory_space<vmem>>, %arg5: memref<128x128xf32, #tpu.memory_space<vmem>>, %arg6: memref<128x128xf32, #tpu.memory_space<vmem>>, %arg7: memref<8x!tpu.dma_semaphore, #tpu.memory_space<semaphore_mem>>) attributes {dimension_semantics = [#tpu.dimension_semantics<parallel>], iteration_bounds = array<i64: 2>, scalar_prefetch = 1 : i64, scratch_operands = 2 : i64, tpu.core_type = #tpu.core_type<tc>, window_params = [{}, {pipeline_mode = #tpu.pipeline_mode<synchronous>, transform_indices = @transform_1, window_bounds = array<i64: 1, 128>}, {pipeline_mode = #tpu.pipeline_mode<synchronous>, transform_indices = @transform_2, window_bounds = array<i64: 1, 128>}, {transform_indices = @transform_3, window_bounds = array<i64: 128, 128>}]} {
    %c128_i32 = arith.constant 128 : i32
    %0 = arith.muli %arg0, %c128_i32 : i32
    %c0_i32 = arith.constant 0 : i32
    %1 = arith.addi %0, %c0_i32 : i32
    %2 = arith.index_cast %1 : i32 to index
    %3 = memref.load %arg1[%2] : memref<256xi32, #tpu.memory_space<smem>>
    %c0_i32_0 = arith.constant 0 : i32
    %c0_i32_1 = arith.constant 0 : i32
    %4 = tpu.memref_slice %arg2[%3, %c0_i32_1] : memref<512x128xf32, #tpu.memory_space<any>> -> memref<1x128xf32, #tpu.memory_space<any>>
    %c0_i32_2 = arith.constant 0 : i32
    %c0_i32_3 = arith.constant 0 : i32
    %5 = tpu.memref_slice %arg6[%c0_i32_2, %c0_i32_3] : memref<128x128xf32, #tpu.memory_space<vmem>> -> memref<1x128xf32, #tpu.memory_space<vmem>>
    %6 = tpu.memref_slice %arg7[%c0_i32_0] : memref<8x!tpu.dma_semaphore, #tpu.memory_space<semaphore_mem>> -> memref<1x!tpu.dma_semaphore, #tpu.memory_space<semaphore_mem>>
    %7 = tpu.memref_squeeze %6 : memref<1x!tpu.dma_semaphore, #tpu.memory_space<semaphore_mem>> -> memref<!tpu.dma_semaphore, #tpu.memory_space<semaphore_mem>>
    tpu.enqueue_dma source(%4 : memref<1x128xf32, #tpu.memory_space<any>>) target(%5 : memref<1x128xf32, #tpu.memory_space<vmem>>) target_semaphore(%7 : memref<!tpu.dma_semaphore, #tpu.memory_space<semaphore_mem>>)
    %c1_i32 = arith.constant 1 : i32
    %8 = arith.addi %0, %c1_i32 : i32
    %9 = arith.index_cast %8 : i32 to index
    %10 = memref.load %arg1[%9] : memref<256xi32, #tpu.memory_space<smem>>
    %c1_i32_4 = arith.constant 1 : i32
    %c0_i32_5 = arith.constant 0 : i32
    %11 = tpu.memref_slice %arg2[%10, %c0_i32_5] : memref<512x128xf32, #tpu.memory_space<any>> -> memref<1x128xf32, #tpu.memory_space<any>>
    %c1_i32_6 = arith.constant 1 : i32
    %c0_i32_7 = arith.constant 0 : i32
    %12 = tpu.memref_slice %arg6[%c1_i32_6, %c0_i32_7] : memref<128x128xf32, #tpu.memory_space<vmem>> -> memref<1x128xf32, #tpu.memory_space<vmem>>
    %13 = tpu.memref_slice %arg7[%c1_i32_4] : memref<8x!tpu.dma_semaphore, #tpu.memory_space<semaphore_mem>> -> memref<1x!tpu.dma_semaphore, #tpu.memory_space<semaphore_mem>>
    %14 = tpu.memref_squeeze %13 : memref<1x!tpu.dma_semaphore, #tpu.memory_space<semaphore_mem>> -> memref<!tpu.dma_semaphore, #tpu.memory_space<semaphore_mem>>
    tpu.enqueue_dma source(%11 : memref<1x128xf32, #tpu.memory_space<any>>) target(%12 : memref<1x128xf32, #tpu.memory_space<vmem>>) target_semaphore(%14 : memref<!tpu.dma_semaphore, #tpu.memory_space<semaphore_mem>>)
    %c2_i32 = arith.constant 2 : i32
    %15 = arith.addi %0, %c2_i32 : i32
    %16 = arith.index_cast %15 : i32 to index
    %17 = memref.load %arg1[%16] : memref<256xi32, #tpu.memory_space<smem>>
    %c2_i32_8 = arith.constant 2 : i32
    %c0_i32_9 = arith.constant 0 : i32
    %18 = tpu.memref_slice %arg2[%17, %c0_i32_9] : memref<512x128xf32, #tpu.memory_space<any>> -> memref<1x128xf32, #tpu.memory_space<any>>
    %c2_i32_10 = arith.constant 2 : i32
    %c0_i32_11 = arith.constant 0 : i32
    %19 = tpu.memref_slice %arg6[%c2_i32_10, %c0_i32_11] : memref<128x128xf32, #tpu.memory_space<vmem>> -> memref<1x128xf32, #tpu.memory_space<vmem>>
    %20 = tpu.memref_slice %arg7[%c2_i32_8] : memref<8x!tpu.dma_semaphore, #tpu.memory_space<semaphore_mem>> -> memref<1x!tpu.dma_semaphore, #tpu.memory_space<semaphore_mem>>
    %21 = tpu.memref_squeeze %20 : memref<1x!tpu.dma_semaphore, #tpu.memory_space<semaphore_mem>> -> memref<!tpu.dma_semaphore, #tpu.memory_space<semaphore_mem>>
    tpu.enqueue_dma source(%18 : memref<1x128xf32, #tpu.memory_space<any>>) target(%19 : memref<1x128xf32, #tpu.memory_space<vmem>>) target_semaphore(%21 : memref<!tpu.dma_semaphore, #tpu.memory_space<semaphore_mem>>)
    %c3_i32 = arith.constant 3 : i32
    %22 = arith.addi %0, %c3_i32 : i32
    %23 = arith.index_cast %22 : i32 to index
    %24 = memref.load %arg1[%23] : memref<256xi32, #tpu.memory_space<smem>>
    %c3_i32_12 = arith.constant 3 : i32
    %c0_i32_13 = arith.constant 0 : i32
    %25 = tpu.memref_slice %arg2[%24, %c0_i32_13] : memref<512x128xf32, #tpu.memory_space<any>> -> memref<1x128xf32, #tpu.memory_space<any>>
    %c3_i32_14 = arith.constant 3 : i32
    %c0_i32_15 = arith.constant 0 : i32
    %26 = tpu.memref_slice %arg6[%c3_i32_14, %c0_i32_15] : memref<128x128xf32, #tpu.memory_space<vmem>> -> memref<1x128xf32, #tpu.memory_space<vmem>>
    %27 = tpu.memref_slice %arg7[%c3_i32_12] : memref<8x!tpu.dma_semaphore, #tpu.memory_space<semaphore_mem>> -> memref<1x!tpu.dma_semaphore, #tpu.memory_space<semaphore_mem>>
    %28 = tpu.memref_squeeze %27 : memref<1x!tpu.dma_semaphore, #tpu.memory_space<semaphore_mem>> -> memref<!tpu.dma_semaphore, #tpu.memory_space<semaphore_mem>>
    tpu.enqueue_dma source(%25 : memref<1x128xf32, #tpu.memory_space<any>>) target(%26 : memref<1x128xf32, #tpu.memory_space<vmem>>) target_semaphore(%28 : memref<!tpu.dma_semaphore, #tpu.memory_space<semaphore_mem>>)
    %c4_i32 = arith.constant 4 : i32
    %29 = arith.addi %0, %c4_i32 : i32
    %30 = arith.index_cast %29 : i32 to index
    %31 = memref.load %arg1[%30] : memref<256xi32, #tpu.memory_space<smem>>
    %c4_i32_16 = arith.constant 4 : i32
    %c0_i32_17 = arith.constant 0 : i32
    %32 = tpu.memref_slice %arg2[%31, %c0_i32_17] : memref<512x128xf32, #tpu.memory_space<any>> -> memref<1x128xf32, #tpu.memory_space<any>>
    %c4_i32_18 = arith.constant 4 : i32
    %c0_i32_19 = arith.constant 0 : i32
    %33 = tpu.memref_slice %arg6[%c4_i32_18, %c0_i32_19] : memref<128x128xf32, #tpu.memory_space<vmem>> -> memref<1x128xf32, #tpu.memory_space<vmem>>
    %34 = tpu.memref_slice %arg7[%c4_i32_16] : memref<8x!tpu.dma_semaphore, #tpu.memory_space<semaphore_mem>> -> memref<1x!tpu.dma_semaphore, #tpu.memory_space<semaphore_mem>>
    %35 = tpu.memref_squeeze %34 : memref<1x!tpu.dma_semaphore, #tpu.memory_space<semaphore_mem>> -> memref<!tpu.dma_semaphore, #tpu.memory_space<semaphore_mem>>
    tpu.enqueue_dma source(%32 : memref<1x128xf32, #tpu.memory_space<any>>) target(%33 : memref<1x128xf32, #tpu.memory_space<vmem>>) target_semaphore(%35 : memref<!tpu.dma_semaphore, #tpu.memory_space<semaphore_mem>>)
    %c5_i32 = arith.constant 5 : i32
    %36 = arith.addi %0, %c5_i32 : i32
    %37 = arith.index_cast %36 : i32 to index
    %38 = memref.load %arg1[%37] : memref<256xi32, #tpu.memory_space<smem>>
    %c5_i32_20 = arith.constant 5 : i32
    %c0_i32_21 = arith.constant 0 : i32
    %39 = tpu.memref_slice %arg2[%38, %c0_i32_21] : memref<512x128xf32, #tpu.memory_space<any>> -> memref<1x128xf32, #tpu.memory_space<any>>
    %c5_i32_22 = arith.constant 5 : i32
    %c0_i32_23 = arith.constant 0 : i32
    %40 = tpu.memref_slice %arg6[%c5_i32_22, %c0_i32_23] : memref<128x128xf32, #tpu.memory_space<vmem>> -> memref<1x128xf32, #tpu.memory_space<vmem>>
    %41 = tpu.memref_slice %arg7[%c5_i32_20] : memref<8x!tpu.dma_semaphore, #tpu.memory_space<semaphore_mem>> -> memref<1x!tpu.dma_semaphore, #tpu.memory_space<semaphore_mem>>
    %42 = tpu.memref_squeeze %41 : memref<1x!tpu.dma_semaphore, #tpu.memory_space<semaphore_mem>> -> memref<!tpu.dma_semaphore, #tpu.memory_space<semaphore_mem>>
    tpu.enqueue_dma source(%39 : memref<1x128xf32, #tpu.memory_space<any>>) target(%40 : memref<1x128xf32, #tpu.memory_space<vmem>>) target_semaphore(%42 : memref<!tpu.dma_semaphore, #tpu.memory_space<semaphore_mem>>)
    %c6_i32 = arith.constant 6 : i32
    %43 = arith.addi %0, %c6_i32 : i32
    %44 = arith.index_cast %43 : i32 to index
    %45 = memref.load %arg1[%44] : memref<256xi32, #tpu.memory_space<smem>>
    %c6_i32_24 = arith.constant 6 : i32
    %c0_i32_25 = arith.constant 0 : i32
    %46 = tpu.memref_slice %arg2[%45, %c0_i32_25] : memref<512x128xf32, #tpu.memory_space<any>> -> memref<1x128xf32, #tpu.memory_space<any>>
    %c6_i32_26 = arith.constant 6 : i32
    %c0_i32_27 = arith.constant 0 : i32
    %47 = tpu.memref_slice %arg6[%c6_i32_26, %c0_i32_27] : memref<128x128xf32, #tpu.memory_space<vmem>> -> memref<1x128xf32, #tpu.memory_space<vmem>>
    %48 = tpu.memref_slice %arg7[%c6_i32_24] : memref<8x!tpu.dma_semaphore, #tpu.memory_space<semaphore_mem>> -> memref<1x!tpu.dma_semaphore, #tpu.memory_space<semaphore_mem>>
    %49 = tpu.memref_squeeze %48 : memref<1x!tpu.dma_semaphore, #tpu.memory_space<semaphore_mem>> -> memref<!tpu.dma_semaphore, #tpu.memory_space<semaphore_mem>>
    tpu.enqueue_dma source(%46 : memref<1x128xf32, #tpu.memory_space<any>>) target(%47 : memref<1x128xf32, #tpu.memory_space<vmem>>) target_semaphore(%49 : memref<!tpu.dma_semaphore, #tpu.memory_space<semaphore_mem>>)
    %c7_i32 = arith.constant 7 : i32
    %50 = arith.addi %0, %c7_i32 : i32
    %51 = arith.index_cast %50 : i32 to index
    %52 = memref.load %arg1[%51] : memref<256xi32, #tpu.memory_space<smem>>
    %c7_i32_28 = arith.constant 7 : i32
    %c0_i32_29 = arith.constant 0 : i32
    %53 = tpu.memref_slice %arg2[%52, %c0_i32_29] : memref<512x128xf32, #tpu.memory_space<any>> -> memref<1x128xf32, #tpu.memory_space<any>>
    %c7_i32_30 = arith.constant 7 : i32
    %c0_i32_31 = arith.constant 0 : i32
    %54 = tpu.memref_slice %arg6[%c7_i32_30, %c0_i32_31] : memref<128x128xf32, #tpu.memory_space<vmem>> -> memref<1x128xf32, #tpu.memory_space<vmem>>
    %55 = tpu.memref_slice %arg7[%c7_i32_28] : memref<8x!tpu.dma_semaphore, #tpu.memory_space<semaphore_mem>> -> memref<1x!tpu.dma_semaphore, #tpu.memory_space<semaphore_mem>>
    %56 = tpu.memref_squeeze %55 : memref<1x!tpu.dma_semaphore, #tpu.memory_space<semaphore_mem>> -> memref<!tpu.dma_semaphore, #tpu.memory_space<semaphore_mem>>
    tpu.enqueue_dma source(%53 : memref<1x128xf32, #tpu.memory_space<any>>) target(%54 : memref<1x128xf32, #tpu.memory_space<vmem>>) target_semaphore(%56 : memref<!tpu.dma_semaphore, #tpu.memory_space<semaphore_mem>>)
    %c0_i32_32 = arith.constant 0 : i32
    %c128_i32_33 = arith.constant 128 : i32
    %57 = arith.addi %c0_i32_32, %c128_i32_33 : i32
    %c1_i32_34 = arith.constant 1 : i32
    scf.for %arg8 = %c0_i32_32 to %57 step %c1_i32_34  : i32 {
      %c8_i32 = arith.constant 8 : i32
      %c0_i32_47 = arith.constant 0 : i32
      %82 = arith.cmpi eq, %c8_i32, %c0_i32_47 : i32
      %c1_i32_48 = arith.constant 1 : i32
      %83 = arith.select %82, %c1_i32_48, %c8_i32 : i32
      %84 = arith.remsi %arg8, %83 : i32
      %c0_i32_49 = arith.constant 0 : i32
      %85 = arith.cmpi ne, %84, %c0_i32_49 : i32
      %c0_i32_50 = arith.constant 0 : i32
      %86 = arith.cmpi slt, %84, %c0_i32_50 : i32
      %c0_i32_51 = arith.constant 0 : i32
      %87 = arith.cmpi slt, %83, %c0_i32_51 : i32
      %88 = arith.xori %86, %87 : i1
      %89 = arith.andi %88, %85 : i1
      %90 = arith.addi %84, %83 : i32
      %91 = arith.select %89, %90, %84 : i32
      %c0_i32_52 = arith.constant 0 : i32
      %c0_i32_53 = arith.constant 0 : i32
      %92 = tpu.memref_slice %arg2[%c0_i32_52, %c0_i32_53] : memref<512x128xf32, #tpu.memory_space<any>> -> memref<1x128xf32, #tpu.memory_space<any>>
      %c0_i32_54 = arith.constant 0 : i32
      %93 = tpu.memref_slice %arg6[%arg8, %c0_i32_54] : memref<128x128xf32, #tpu.memory_space<vmem>> -> memref<1x128xf32, #tpu.memory_space<vmem>>
      %94 = tpu.memref_slice %arg7[%91] : memref<8x!tpu.dma_semaphore, #tpu.memory_space<semaphore_mem>> -> memref<1x!tpu.dma_semaphore, #tpu.memory_space<semaphore_mem>>
      %95 = tpu.memref_squeeze %94 : memref<1x!tpu.dma_semaphore, #tpu.memory_space<semaphore_mem>> -> memref<!tpu.dma_semaphore, #tpu.memory_space<semaphore_mem>>
      tpu.wait_dma2 semaphore(%95 : memref<!tpu.dma_semaphore, #tpu.memory_space<semaphore_mem>>) src(%92 : memref<1x128xf32, #tpu.memory_space<any>>) dst(%93 : memref<1x128xf32, #tpu.memory_space<vmem>>)
      %c8_i32_55 = arith.constant 8 : i32
      %96 = arith.addi %arg8, %c8_i32_55 : i32
      %c128_i32_56 = arith.constant 128 : i32
      %97 = arith.cmpi slt, %96, %c128_i32_56 : i32
      %98 = arith.extui %97 : i1 to i32
      %c0_i32_57 = arith.constant 0 : i32
      %99 = arith.cmpi ne, %98, %c0_i32_57 : i32
      scf.if %99 {
        %c8_i32_58 = arith.constant 8 : i32
        %100 = arith.addi %arg8, %c8_i32_58 : i32
        %101 = arith.addi %0, %100 : i32
        %102 = arith.index_cast %101 : i32 to index
        %103 = memref.load %arg1[%102] : memref<256xi32, #tpu.memory_space<smem>>
        %c8_i32_59 = arith.constant 8 : i32
        %c0_i32_60 = arith.constant 0 : i32
        %104 = arith.cmpi eq, %c8_i32_59, %c0_i32_60 : i32
        %c1_i32_61 = arith.constant 1 : i32
        %105 = arith.select %104, %c1_i32_61, %c8_i32_59 : i32
        %106 = arith.remsi %100, %105 : i32
        %c0_i32_62 = arith.constant 0 : i32
        %107 = arith.cmpi ne, %106, %c0_i32_62 : i32
        %c0_i32_63 = arith.constant 0 : i32
        %108 = arith.cmpi slt, %106, %c0_i32_63 : i32
        %c0_i32_64 = arith.constant 0 : i32
        %109 = arith.cmpi slt, %105, %c0_i32_64 : i32
        %110 = arith.xori %108, %109 : i1
        %111 = arith.andi %110, %107 : i1
        %112 = arith.addi %106, %105 : i32
        %113 = arith.select %111, %112, %106 : i32
        %c0_i32_65 = arith.constant 0 : i32
        %114 = tpu.memref_slice %arg2[%103, %c0_i32_65] : memref<512x128xf32, #tpu.memory_space<any>> -> memref<1x128xf32, #tpu.memory_space<any>>
        %c0_i32_66 = arith.constant 0 : i32
        %115 = tpu.memref_slice %arg6[%100, %c0_i32_66] : memref<128x128xf32, #tpu.memory_space<vmem>> -> memref<1x128xf32, #tpu.memory_space<vmem>>
        %116 = tpu.memref_slice %arg7[%113] : memref<8x!tpu.dma_semaphore, #tpu.memory_space<semaphore_mem>> -> memref<1x!tpu.dma_semaphore, #tpu.memory_space<semaphore_mem>>
        %117 = tpu.memref_squeeze %116 : memref<1x!tpu.dma_semaphore, #tpu.memory_space<semaphore_mem>> -> memref<!tpu.dma_semaphore, #tpu.memory_space<semaphore_mem>>
        tpu.enqueue_dma source(%114 : memref<1x128xf32, #tpu.memory_space<any>>) target(%115 : memref<1x128xf32, #tpu.memory_space<vmem>>) target_semaphore(%117 : memref<!tpu.dma_semaphore, #tpu.memory_space<semaphore_mem>>)
      } else {
      }
    }
    %c128_i32_35 = arith.constant 128 : i32
    %c0 = arith.constant 0 : index
    %c0_36 = arith.constant 0 : index
    %58 = vector.load %arg6[%c0, %c0_36] : memref<128x128xf32, #tpu.memory_space<vmem>>, vector<128x128xf32>
    %cst = arith.constant dense<0.000000e+00> : vector<128xf32>
    %59 = vector.multi_reduction <add>, %58, %cst [1] : vector<128x128xf32> to vector<128xf32>
    %60 = vector.shape_cast %59 : vector<128xf32> to vector<128x1xf32>
    %cst_37 = arith.constant 1.280000e+02 : f32
    %61 = vector.broadcast %cst_37 : f32 to vector<128x1xf32>
    %62 = arith.divf %60, %61 : vector<128x1xf32>
    %63 = vector.broadcast %62 : vector<128x1xf32> to vector<128x128xf32>
    %64 = arith.subf %58, %63 : vector<128x128xf32>
    %65 = arith.mulf %64, %64 : vector<128x128xf32>
    %cst_38 = arith.constant dense<0.000000e+00> : vector<128xf32>
    %66 = vector.multi_reduction <add>, %65, %cst_38 [1] : vector<128x128xf32> to vector<128xf32>
    %67 = vector.shape_cast %66 : vector<128xf32> to vector<128x1xf32>
    %cst_39 = arith.constant 1.280000e+02 : f32
    %68 = vector.broadcast %cst_39 : f32 to vector<128x1xf32>
    %69 = arith.divf %67, %68 : vector<128x1xf32>
    %cst_40 = arith.constant 9.99999974E-6 : f32
    %70 = vector.broadcast %cst_40 : f32 to vector<128x1xf32>
    %71 = arith.addf %69, %70 : vector<128x1xf32>
    %72 = math.rsqrt %71 : vector<128x1xf32>
    %73 = vector.broadcast %72 : vector<128x1xf32> to vector<128x128xf32>
    %74 = arith.mulf %64, %73 : vector<128x128xf32>
    %c0_41 = arith.constant 0 : index
    %c0_42 = arith.constant 0 : index
    %75 = vector.load %arg3[%c0_41, %c0_42] : memref<1x128xf32, #tpu.memory_space<vmem>>, vector<1x128xf32>
    %76 = vector.broadcast %75 : vector<1x128xf32> to vector<128x128xf32>
    %77 = arith.mulf %74, %76 : vector<128x128xf32>
    %c0_43 = arith.constant 0 : index
    %c0_44 = arith.constant 0 : index
    %78 = vector.load %arg4[%c0_43, %c0_44] : memref<1x128xf32, #tpu.memory_space<vmem>>, vector<1x128xf32>
    %79 = vector.broadcast %78 : vector<1x128xf32> to vector<128x128xf32>
    %80 = arith.addf %77, %79 : vector<128x128xf32>
    %c0_45 = arith.constant 0 : index
    %c0_46 = arith.constant 0 : index
    %81 = vector.load %arg5[%c0_45, %c0_46] : memref<128x128xf32, #tpu.memory_space<vmem>>, vector<128x128xf32>
    tpu.vector_store %arg5[%c0_45, %c0_46], %80 {strides = array<i32>} : memref<128x128xf32, #tpu.memory_space<vmem>>, vector<128x128xf32>,
    return
  }
  func.func @transform_1(%arg0: i32, %arg1: memref<256xi32, #tpu.memory_space<smem>>) -> (i32, i32) {
    %c0_i32 = arith.constant 0 : i32
    %c0_i32_0 = arith.constant 0 : i32
    %c0_i32_1 = arith.constant 0 : i32
    return %c0_i32, %c0_i32_0 : i32, i32
  }
  func.func @transform_2(%arg0: i32, %arg1: memref<256xi32, #tpu.memory_space<smem>>) -> (i32, i32) {
    %c0_i32 = arith.constant 0 : i32
    %c0_i32_0 = arith.constant 0 : i32
    %c0_i32_1 = arith.constant 0 : i32
    return %c0_i32, %c0_i32_0 : i32, i32
  }
  func.func @transform_3(%arg0: i32, %arg1: memref<256xi32, #tpu.memory_space<smem>>) -> (i32, i32) {
    %c0_i32 = arith.constant 0 : i32
    %c0_i32_0 = arith.constant 0 : i32
    return %arg0, %c0_i32 : i32, i32
  }
}

</mosaic_0001>

<llo_original>
// kernel: tpu_custom_call.1
$region0: #{tpu_custom_call.1}
  #allocation0 [shape = 'u32[]', space=smem, size = 0x4, offset = 0x4, fixed_abs, tag = 'smem constant byte address 0x4 - core index']
  #allocation1 [shape = 'u32[144,128]{1,0:T(1,128)}', space=vmem, size = 0x12000, scoped, tag = 'internal scratch']
  #allocation2 [shape = 'f32[128,128]{1,0:T(8,128)}', space=vmem, size = 0x10000, scoped, tag = 'scratch operand']
  #allocation3 [shape = 's32[8]{0}', space=sflag, size = 0x20, scoped, tag = 'scratch operand']
  #allocation4 [shape = 's32[1]{0}', space=sflag, size = 0x4, scoped, tag = 'scoped memory for tpu_custom_call.1']
  #allocation5 [shape = 'u8[1024]{0}', space=smem, size = 0x400, scoped, tag = 'prefetched SMEM operand 0']
  #allocation8 [shape = 's32[]', space=sflag, size = 0x4, offset = 0, fixed_abs, tag = 'sflag constant byte address 0x0 - dummy sync flag']
  #allocation9 [shape = 's32[]', space=sflag, size = 0x4, offset = 0, fixed_abs, tag = 'sflag constant byte address 0x0 - dummy sync flag']
  #allocation10 [shape = 'u32[]', space=smem, size = 0x4, offset = 0x44, fixed_abs, tag = 'smem constant byte address 0x44 - assertion arg 0']
  #allocation11 [shape = 'u32[]', space=smem, size = 0x4, offset = 0x48, fixed_abs, tag = 'smem constant byte address 0x48 - assertion arg 1']
  #allocation12 [shape = 's32[]', space=sflag, size = 0x4, offset = 0, fixed_abs, tag = 'sflag constant byte address 0x0 - dummy sync flag']
  #allocation13 [shape = 's32[]', space=sflag, size = 0x4, offset = 0, fixed_abs, tag = 'sflag constant byte address 0x0 - dummy sync flag']
  #allocation14 [shape = 's32[]', space=sflag, size = 0x4, offset = 0, fixed_abs, tag = 'sflag constant byte address 0x0 - dummy sync flag']
  #allocation15 [shape = 's32[]', space=sflag, size = 0x4, offset = 0, fixed_abs, tag = 'sflag constant byte address 0x0 - dummy sync flag']
  #allocation16 [shape = 's32[]', space=sflag, size = 0x4, offset = 0, fixed_abs, tag = 'sflag constant byte address 0x0 - dummy sync flag']
  #allocation17 [shape = 's32[]', space=sflag, size = 0x4, offset = 0, fixed_abs, tag = 'sflag constant byte address 0x0 - dummy sync flag']
  #allocation18 [shape = 's32[]', space=sflag, size = 0x4, offset = 0, fixed_abs, tag = 'sflag constant byte address 0x0 - dummy sync flag']
  #allocation19 [shape = 's32[]', space=sflag, size = 0x4, offset = 0, fixed_abs, tag = 'sflag constant byte address 0x0 - dummy sync flag']
  #allocation20 [shape = 's32[]', space=sflag, size = 0x4, offset = 0, fixed_abs, tag = 'sflag constant byte address 0x0 - dummy sync flag']
  #allocation21 [shape = 's32[]', space=sflag, size = 0x4, offset = 0, fixed_abs, tag = 'sflag constant byte address 0x0 - dummy sync flag']
  #allocation22 [shape = 's32[]', space=sflag, size = 0x4, offset = 0, fixed_abs, tag = 'sflag constant byte address 0x0 - dummy sync flag']
  #allocation23 [shape = 's32[]', space=sflag, size = 0x4, offset = 0, fixed_abs, tag = 'sflag constant byte address 0x0 - dummy sync flag']
  #allocation24 [shape = 's32[]', space=sflag, size = 0x4, offset = 0, fixed_abs, tag = 'sflag constant byte address 0x0 - dummy sync flag']
  #allocation25 [shape = 's32[]', space=sflag, size = 0x4, offset = 0, fixed_abs, tag = 'sflag constant byte address 0x0 - dummy sync flag']
  #allocation26 [shape = 's32[]', space=sflag, size = 0x4, offset = 0, fixed_abs, tag = 'sflag constant byte address 0x0 - dummy sync flag']
  #allocation27 [shape = 's32[]', space=sflag, size = 0x4, offset = 0, fixed_abs, tag = 'sflag constant byte address 0x0 - dummy sync flag']
  %s0 = inlined_call_operand.hbm [shape: s32[256], index: 0, kind: input, shape index: {}]
  %s1 = inlined_call_operand.hbm [shape: f32[512,128], index: 1, kind: input, shape index: {}]
  %s2 = inlined_call_operand.vmem [shape: f32[1,128], index: 2, kind: input, shape index: {}]
  %s3 = inlined_call_operand.vmem [shape: f32[1,128], index: 3, kind: input, shape index: {}]
  %s4 = inlined_call_operand.hbm [shape: f32[256,128], index: 4, kind: output, shape index: {}]
  %s5 = sld [smem:[#allocation0]]
  $region88: #{tpu_custom_call.1} parent=0
    _
  %s7 = ssub.s32 1, %s5
  %s8 = scalar_select 0, %s7, %s5
  %10 = dma.hbm_to_smem %s0, 32, [#allocation5], [#allocation4]
  %11 = dma.done [#allocation4], 32
  %12 = sfence
  $region1: #{tpu_custom_call.1} parent=0
    #allocation6 [shape = 'u8[131072]{0}', space=vmem, size = 0x20000, scoped, tag = 'output window, operand 0']
    #allocation7 [shape = 's32[2]{0}', space=sflag, size = 0x8, scoped, tag = 'scoped memory for tpu_custom_call.1']
    %13 = vsyncpa [#allocation7], 0
    %s14 = scalar_lea.sflag [#allocation7], 1
    %15 = vsyncpa %s14, 0
    loop: start=0, step=1, limit=4
    $region2: #{tpu_custom_call.1} parent=1 // loop_pre_header
      _
    $region3: #{tpu_custom_call.1} parent=1 // loop_header
      %s17 = sphi 0, %s21
      %p18 = scmp.ge.s32.totalorder %s17, 4
      %s25 = sphi 0, %s25
      %s27 = sphi 0, %s25
      %s28 = sphi 0, %s27
      %s42 = sphi 0, %s28
      %s46 = sphi 0, %s46
      %s48 = sphi 0, %s46
      %s49 = sphi 0, %s48
      %s63 = sphi 0, %s49
      %s69 = sphi 0, %s71
      %s72 = sphi 0, %s69
      %s73 = sphi 0, %s72
      %s89 = sphi 0, %s73
    $region4: #{tpu_custom_call.1} parent=1 // loop_header_branch
      %20 = sbr.rel (%p18) target = $region8
    $region5: #{tpu_custom_call.1} parent=1 // loop_body
      %s22 = ssub.s32 %s17, 1
      %s23 = ssub.s32 %s17, 2
      %s24 = sadd.s32 %s17, 1
      %s26 = sadd.s32 %s25, 1
      %p29 = scmp.eq.s32.totalorder %s17, 1
      %p30 = scmp.ne.s32.totalorder %s25, %s27
      %p31 = scmp.eq.s32.totalorder %s17, 0
      %p32 = por %p30, %p31
      %p33 = scmp.ne.s32.totalorder %s25, %s27
      %p34 = scmp.eq.s32.totalorder %s22, 1
      %p35 = por %p33, %p34
      %p36 = scmp.ne.s32.totalorder %s27, %s28
      %p37 = scmp.eq.s32.totalorder %s22, 0
      %p38 = por %p36, %p37
      %p39 = scmp.ne.s32.totalorder %s27, %s28
      %p40 = scmp.eq.s32.totalorder %s23, 1
      %p41 = por %p39, %p40
      %p43 = scmp.ne.s32.totalorder %s28, %s42
      %p44 = scmp.eq.s32.totalorder %s23, 0
      %p45 = por %p43, %p44
      %s47 = sadd.s32 %s46, 1
      %p50 = scmp.eq.s32.totalorder %s17, 1
      %p51 = scmp.ne.s32.totalorder %s46, %s48
      %p52 = scmp.eq.s32.totalorder %s17, 0
      %p53 = por %p51, %p52
      %p54 = scmp.ne.s32.totalorder %s46, %s48
      %p55 = scmp.eq.s32.totalorder %s22, 1
      %p56 = por %p54, %p55
      %p57 = scmp.ne.s32.totalorder %s48, %s49
      %p58 = scmp.eq.s32.totalorder %s22, 0
      %p59 = por %p57, %p58
      %p60 = scmp.ne.s32.totalorder %s48, %s49
      %p61 = scmp.eq.s32.totalorder %s23, 1
      %p62 = por %p60, %p61
      %p64 = scmp.ne.s32.totalorder %s49, %s63
      %p65 = scmp.eq.s32.totalorder %s23, 0
      %p66 = por %p64, %p65
      %s67 = ssub.s32 %s17, %s24
      %p68 = scmp.eq.s32.totalorder %s67, 0
      %s70 = sadd.s32 %s69, 1
      %s71 = scalar_select %p68, %s69, %s70
      %p74 = pneg %p68
      %p75 = scmp.eq.s32.totalorder %s17, 1
      %p76 = por %p74, %p75
      %p77 = scmp.ne.s32.totalorder %s69, %s72
      %p78 = scmp.eq.s32.totalorder %s17, 0
      %p79 = por %p77, %p78
      %p80 = scmp.ne.s32.totalorder %s69, %s72
      %p81 = scmp.eq.s32.totalorder %s22, 1
      %p82 = por %p80, %p81
      %p83 = scmp.ne.s32.totalorder %s72, %s73
      %p84 = scmp.eq.s32.totalorder %s22, 0
      %p85 = por %p83, %p84
      %p86 = scmp.ne.s32.totalorder %s72, %s73
      %p87 = scmp.eq.s32.totalorder %s23, 1
      %p88 = por %p86, %p87
      %p90 = scmp.ne.s32.totalorder %s73, %s89
      %p91 = scmp.eq.s32.totalorder %s23, 0
      %p92 = por %p90, %p91
      %p93 = scmp.le.s32.totalorder 1, %s17
      %p94 = scmp.lt.s32.totalorder %s17, 3
      %p95 = pnand %p93, %p94
      %p96 = pneg %p95
      // Predicated region
      $region9: #{tpu_custom_call.1} parent=5 // pred_check
        _
      $region10: #{tpu_custom_call.1} parent=5 // pred_check_branch
        %98 = sbr.rel (%p95) target = $region12
      $region11: #{tpu_custom_call.1} parent=5 // pred_region
        %s99 = ssub.s32 %s17, 1
        // Predicated region
        $region13: #{tpu_custom_call.1} parent=11 // pred_check
          %p100 = pneg %p38
        $region14: #{tpu_custom_call.1} parent=11 // pred_check_branch
          %102 = sbr.rel (%p100) target = $region16
        $region15: #{tpu_custom_call.1} parent=11 // pred_region
          _
        $region16: #{tpu_custom_call.1} parent=11 // pred_fallthru
          _
        // Predicated region
        $region17: #{tpu_custom_call.1} parent=11 // pred_check
          %p103 = pneg %p59
        $region18: #{tpu_custom_call.1} parent=11 // pred_check_branch
          %105 = sbr.rel (%p103) target = $region20
        $region19: #{tpu_custom_call.1} parent=11 // pred_region
          _
        $region20: #{tpu_custom_call.1} parent=11 // pred_fallthru
          _
      $region12: #{tpu_custom_call.1} parent=5 // pred_fallthru
        _
      %p106 = scmp.lt.s32.totalorder %s17, 2
      // Predicated region
      $region21: #{tpu_custom_call.1} parent=5 // pred_check
        %p107 = pneg %p106
      $region22: #{tpu_custom_call.1} parent=5 // pred_check_branch
        %109 = sbr.rel (%p107) target = $region24
      $region23: #{tpu_custom_call.1} parent=5 // pred_region
        _
      $region24: #{tpu_custom_call.1} parent=5 // pred_fallthru
        _
      %p110 = scmp.le.s32.totalorder 1, %s17
      %p111 = scmp.lt.s32.totalorder %s17, 3
      %p112 = pnand %p110, %p111
      %p113 = pneg %p112
      // Predicated region
      $region25: #{tpu_custom_call.1} parent=5 // pred_check
        _
      $region26: #{tpu_custom_call.1} parent=5 // pred_check_branch
        %115 = sbr.rel (%p112) target = $region28
      $region27: #{tpu_custom_call.1} parent=5 // pred_region
        %s116 = ssub.s32 %s17, 1
        %p117 = pneg %p38
        %p118 = pneg %p35
        %p119 = pneg %p59
        %p120 = pneg %p56
        %p121 = pneg %p85
        %p122 = pneg %p82
        %s123 = sand.u32 %s72, 1
        %s124 = scalar_lea.sflag [#allocation7], %s123
        %s125 = sand.u32 %s72, 1
        %s126 = smul.addr %s125, 128
        %s127 = scalar_lea.vmem [#allocation6], %s126
        %s128 = smul.u32 16, %s22
        %s129 = smul.u32 %s22, 128
        %s130 = sld [smem:[#allocation5 + %s129]]
        %s131 = smul.addr %s130, 16
        %s132 = scalar_lea.hbm %s1, %s131
        // Predicated region
        $region29: #{tpu_custom_call.1} parent=27 // pred_check
          _
        $region30: #{tpu_custom_call.1} parent=27 // pred_check_branch
          %134 = sbr.rel target = $region32
        $region31: #{tpu_custom_call.1} parent=27 // pred_region
          %135 = sst [smem:[#allocation10]] [#allocation9]
          %136 = sst [smem:[#allocation11]] [#allocation8]
        $region32: #{tpu_custom_call.1} parent=27 // pred_fallthru
          _
        %138 = shalt.err (0)
        %s140 = sshll.u32 [#allocation2], 4
        %s141 = int_to_ptr.vmem [resolvable:$true] %s140
        %143 = dma.hbm_to_vmem [thread:$0]  %s132, 16, %s141, [#allocation3]
        %s144 = sadd.s32 %s129, 1
        %s145 = sld [smem:[#allocation5 + %s144]]
        %s146 = smul.addr %s145, 16
        %s147 = scalar_lea.hbm %s1, %s146
        %s148 = scalar_lea.vmem [#allocation2], 1
        %s149 = scalar_lea.sflag [#allocation3], 1
        // Predicated region
        $region33: #{tpu_custom_call.1} parent=27 // pred_check
          _
        $region34: #{tpu_custom_call.1} parent=27 // pred_check_branch
          %151 = sbr.rel target = $region36
        $region35: #{tpu_custom_call.1} parent=27 // pred_region
          %152 = sst [smem:[#allocation10]] [#allocation13]
          %153 = sst [smem:[#allocation11]] [#allocation12]
        $region36: #{tpu_custom_call.1} parent=27 // pred_fallthru
          _
        %155 = shalt.err (0)
        %s157 = sshll.u32 %s148, 4
        %s158 = int_to_ptr.vmem [resolvable:$true] %s157
        %160 = dma.hbm_to_vmem [thread:$0]  %s147, 16, %s158, %s149
        %s161 = sadd.s32 %s129, 2
        %s162 = sld [smem:[#allocation5 + %s161]]
        %s163 = smul.addr %s162, 16
        %s164 = scalar_lea.hbm %s1, %s163
        %s165 = scalar_lea.vmem [#allocation2], 2
        %s166 = scalar_lea.sflag [#allocation3], 2
        // Predicated region
        $region37: #{tpu_custom_call.1} parent=27 // pred_check
          _
        $region38: #{tpu_custom_call.1} parent=27 // pred_check_branch
          %168 = sbr.rel target = $region40
        $region39: #{tpu_custom_call.1} parent=27 // pred_region
          %169 = sst [smem:[#allocation10]] [#allocation15]
          %170 = sst [smem:[#allocation11]] [#allocation14]
        $region40: #{tpu_custom_call.1} parent=27 // pred_fallthru
          _
        %172 = shalt.err (0)
        %s174 = sshll.u32 %s165, 4
        %s175 = int_to_ptr.vmem [resolvable:$true] %s174
        %177 = dma.hbm_to_vmem [thread:$0]  %s164, 16, %s175, %s166
        %s178 = sadd.s32 %s129, 3
        %s179 = sld [smem:[#allocation5 + %s178]]
        %s180 = smul.addr %s179, 16
        %s181 = scalar_lea.hbm %s1, %s180
        %s182 = scalar_lea.vmem [#allocation2], 3
        %s183 = scalar_lea.sflag [#allocation3], 3
        // Predicated region
        $region41: #{tpu_custom_call.1} parent=27 // pred_check
          _
        $region42: #{tpu_custom_call.1} parent=27 // pred_check_branch
          %185 = sbr.rel target = $region44
        $region43: #{tpu_custom_call.1} parent=27 // pred_region
          %186 = sst [smem:[#allocation10]] [#allocation17]
          %187 = sst [smem:[#allocation11]] [#allocation16]
        $region44: #{tpu_custom_call.1} parent=27 // pred_fallthru
          _
        %189 = shalt.err (0)
        %s191 = sshll.u32 %s182, 4
        %s192 = int_to_ptr.vmem [resolvable:$true] %s191
        %194 = dma.hbm_to_vmem [thread:$0]  %s181, 16, %s192, %s183
        %s195 = sadd.s32 %s129, 4
        %s196 = sld [smem:[#allocation5 + %s195]]
        %s197 = smul.addr %s196, 16
        %s198 = scalar_lea.hbm %s1, %s197
        %s199 = scalar_lea.vmem [#allocation2], 4
        %s200 = scalar_lea.sflag [#allocation3], 4
        // Predicated region
        $region45: #{tpu_custom_call.1} parent=27 // pred_check
          _
        $region46: #{tpu_custom_call.1} parent=27 // pred_check_branch
          %202 = sbr.rel target = $region48
        $region47: #{tpu_custom_call.1} parent=27 // pred_region
          %203 = sst [smem:[#allocation10]] [#allocation19]
          %204 = sst [smem:[#allocation11]] [#allocation18]
        $region48: #{tpu_custom_call.1} parent=27 // pred_fallthru
          _
        %206 = shalt.err (0)
        %s208 = sshll.u32 %s199, 4
        %s209 = int_to_ptr.vmem [resolvable:$true] %s208
        %211 = dma.hbm_to_vmem [thread:$0]  %s198, 16, %s209, %s200
        %s212 = sadd.s32 %s129, 5
        %s213 = sld [smem:[#allocation5 + %s212]]
        %s214 = smul.addr %s213, 16
        %s215 = scalar_lea.hbm %s1, %s214
        %s216 = scalar_lea.vmem [#allocation2], 5
        %s217 = scalar_lea.sflag [#allocation3], 5
        // Predicated region
        $region49: #{tpu_custom_call.1} parent=27 // pred_check
          _
        $region50: #{tpu_custom_call.1} parent=27 // pred_check_branch
          %219 = sbr.rel target = $region52
        $region51: #{tpu_custom_call.1} parent=27 // pred_region
          %220 = sst [smem:[#allocation10]] [#allocation21]
          %221 = sst [smem:[#allocation11]] [#allocation20]
        $region52: #{tpu_custom_call.1} parent=27 // pred_fallthru
          _
        %223 = shalt.err (0)
        %s225 = sshll.u32 %s216, 4
        %s226 = int_to_ptr.vmem [resolvable:$true] %s225
        %228 = dma.hbm_to_vmem [thread:$0]  %s215, 16, %s226, %s217
        %s229 = sadd.s32 %s129, 6
        %s230 = sld [smem:[#allocation5 + %s229]]
        %s231 = smul.addr %s230, 16
        %s232 = scalar_lea.hbm %s1, %s231
        %s233 = scalar_lea.vmem [#allocation2], 6
        %s234 = scalar_lea.sflag [#allocation3], 6
        // Predicated region
        $region53: #{tpu_custom_call.1} parent=27 // pred_check
          _
        $region54: #{tpu_custom_call.1} parent=27 // pred_check_branch
          %236 = sbr.rel target = $region56
        $region55: #{tpu_custom_call.1} parent=27 // pred_region
          %237 = sst [smem:[#allocation10]] [#allocation23]
          %238 = sst [smem:[#allocation11]] [#allocation22]
        $region56: #{tpu_custom_call.1} parent=27 // pred_fallthru
          _
        %240 = shalt.err (0)
        %s242 = sshll.u32 %s233, 4
        %s243 = int_to_ptr.vmem [resolvable:$true] %s242
        %245 = dma.hbm_to_vmem [thread:$0]  %s232, 16, %s243, %s234
        %s246 = sadd.s32 %s129, 7
        %s247 = sld [smem:[#allocation5 + %s246]]
        %s248 = smul.addr %s247, 16
        %s249 = scalar_lea.hbm %s1, %s248
        %s250 = scalar_lea.vmem [#allocation2], 7
        %s251 = scalar_lea.sflag [#allocation3], 7
        // Predicated region
        $region57: #{tpu_custom_call.1} parent=27 // pred_check
          _
        $region58: #{tpu_custom_call.1} parent=27 // pred_check_branch
          %253 = sbr.rel target = $region60
        $region59: #{tpu_custom_call.1} parent=27 // pred_region
          %254 = sst [smem:[#allocation10]] [#allocation25]
          %255 = sst [smem:[#allocation11]] [#allocation24]
        $region60: #{tpu_custom_call.1} parent=27 // pred_fallthru
          _
        %257 = shalt.err (0)
        %s259 = sshll.u32 %s250, 4
        %s260 = int_to_ptr.vmem [resolvable:$true] %s259
        %262 = dma.hbm_to_vmem [thread:$0]  %s249, 16, %s260, %s251
        loop: start=0, step=1, limit=128
        $region61: #{tpu_custom_call.1} parent=27 // loop_pre_header
          _
        $region62: #{tpu_custom_call.1} parent=27 // loop_header
          %s264 = sphi 0, %s268
          %p265 = scmp.ge.s32.totalorder %s264, 128
        $region63: #{tpu_custom_call.1} parent=27 // loop_header_branch
          %267 = sbr.rel (%p265) target = $region67
        $region64: #{tpu_custom_call.1} parent=27 // loop_body
          %p269 = scmp.lt.s32.totalorder %s264, 0
          %s270 = ssub.s32 0, %s264
          %s271 = scalar_select %p269, %s270, %s264
          %s272 = sand.u32 %s271, 7
          %s273 = ssub.s32 0, %s272
          %s274 = scalar_select %p269, %s273, %s272
          %p275 = scmp.ne.s32.totalorder %s274, 0
          %p276 = scmp.lt.s32.totalorder %s274, 0
          %p277 = pnand %p276, %p275
          %p278 = pneg %p277
          %s279 = sadd.s32 %s274, 8
          %s280 = scalar_select %p278, %s279, %s274
          %s281 = scalar_lea.sflag [#allocation3], %s280
          %s282 = smul.u32 1, 1
          %s283 = sshll.u32 %s282, 4
          %284 = dma.done %s281, %s283
          %s285 = sadd.s32 %s264, 8
          %p286 = scmp.lt.s32.totalorder %s285, 128
          // Predicated region
          $region68: #{tpu_custom_call.1} parent=64 // pred_check
            %p287 = pneg %p286
          $region69: #{tpu_custom_call.1} parent=64 // pred_check_branch
            %289 = sbr.rel (%p287) target = $region71
          $region70: #{tpu_custom_call.1} parent=64 // pred_region
            %s290 = sadd.s32 %s129, %s285
            %s291 = sld [smem:[#allocation5 + %s290]]
            %p292 = scmp.lt.s32.totalorder %s285, 0
            %s293 = ssub.s32 0, %s285
            %s294 = scalar_select %p292, %s293, %s285
            %s295 = sand.u32 %s294, 7
            %s296 = ssub.s32 0, %s295
            %s297 = scalar_select %p292, %s296, %s295
            %p298 = scmp.ne.s32.totalorder %s297, 0
            %p299 = scmp.lt.s32.totalorder %s297, 0
            %p300 = pnand %p299, %p298
            %p301 = pneg %p300
            %s302 = sadd.s32 %s297, 8
            %s303 = scalar_select %p301, %s302, %s297
            %s304 = smul.addr %s291, 16
            %s305 = scalar_lea.hbm %s1, %s304
            %s306 = scalar_lea.vmem [#allocation2], %s285
            %s307 = scalar_lea.sflag [#allocation3], %s303
            // Predicated region
            $region72: #{tpu_custom_call.1} parent=70 // pred_check
              _
            $region73: #{tpu_custom_call.1} parent=70 // pred_check_branch
              %309 = sbr.rel target = $region75
            $region74: #{tpu_custom_call.1} parent=70 // pred_region
              %310 = sst [smem:[#allocation10]] [#allocation27]
              %311 = sst [smem:[#allocation11]] [#allocation26]
            $region75: #{tpu_custom_call.1} parent=70 // pred_fallthru
              _
            %313 = shalt.err (0)
            %s315 = sshll.u32 %s306, 4
            %s316 = int_to_ptr.vmem [resolvable:$true] %s315
            %318 = dma.hbm_to_vmem [thread:$0]  %s305, 16, %s316, %s307
          $region71: #{tpu_custom_call.1} parent=64 // pred_fallthru
            _
        $region65: #{tpu_custom_call.1} parent=27 // loop_footer
          %s268 = sadd.s32 1, %s264
        $region66: #{tpu_custom_call.1} parent=27 // loop_footer_branch
          %263 = sbr.rel target = $region62
        $region67: #{tpu_custom_call.1} parent=27 // loop_exit
          _
        %v319 = vld [vmem:[#allocation2] sm:$0xff]
        %v320 = vld [vmem:[#allocation2 + $0x8] sm:$0xff]
        %v321 = vld [vmem:[#allocation2 + $0x10] sm:$0xff]
        %v322 = vld [vmem:[#allocation2 + $0x18] sm:$0xff]
        %v323 = vld [vmem:[#allocation2 + $0x20] sm:$0xff]
        %v324 = vld [vmem:[#allocation2 + $0x28] sm:$0xff]
        %v325 = vld [vmem:[#allocation2 + $0x30] sm:$0xff]
        %v326 = vld [vmem:[#allocation2 + $0x38] sm:$0xff]
        %v327 = vld [vmem:[#allocation2 + $0x40] sm:$0xff]
        %v328 = vld [vmem:[#allocation2 + $0x48] sm:$0xff]
        %v329 = vld [vmem:[#allocation2 + $0x50] sm:$0xff]
        %v330 = vld [vmem:[#allocation2 + $0x58] sm:$0xff]
        %v331 = vld [vmem:[#allocation2 + $0x60] sm:$0xff]
        %v332 = vld [vmem:[#allocation2 + $0x68] sm:$0xff]
        %v333 = vld [vmem:[#allocation2 + $0x70] sm:$0xff]
        %v334 = vld [vmem:[#allocation2 + $0x78] sm:$0xff]
        %335 = vadd.xlane.f32.xlu0 %v319
        %v336 = vpop.xlane.xlu0 %335
        %337 = vadd.xlane.f32.xlu0 %v320
        %v338 = vpop.xlane.xlu0 %337
        %339 = vadd.xlane.f32.xlu0 %v321
        %v340 = vpop.xlane.xlu0 %339
        %341 = vadd.xlane.f32.xlu0 %v322
        %v342 = vpop.xlane.xlu0 %341
        %343 = vadd.xlane.f32.xlu0 %v323
        %v344 = vpop.xlane.xlu0 %343
        %345 = vadd.xlane.f32.xlu0 %v324
        %v346 = vpop.xlane.xlu0 %345
        %347 = vadd.xlane.f32.xlu0 %v325
        %v348 = vpop.xlane.xlu0 %347
        %349 = vadd.xlane.f32.xlu0 %v326
        %v350 = vpop.xlane.xlu0 %349
        %351 = vadd.xlane.f32.xlu0 %v327
        %v352 = vpop.xlane.xlu0 %351
        %353 = vadd.xlane.f32.xlu0 %v328
        %v354 = vpop.xlane.xlu0 %353
        %355 = vadd.xlane.f32.xlu0 %v329
        %v356 = vpop.xlane.xlu0 %355
        %357 = vadd.xlane.f32.xlu0 %v330
        %v358 = vpop.xlane.xlu0 %357
        %359 = vadd.xlane.f32.xlu0 %v331
        %v360 = vpop.xlane.xlu0 %359
        %361 = vadd.xlane.f32.xlu0 %v332
        %v362 = vpop.xlane.xlu0 %361
        %363 = vadd.xlane.f32.xlu0 %v333
        %v364 = vpop.xlane.xlu0 %363
        %365 = vadd.xlane.f32.xlu0 %v334
        %v366 = vpop.xlane.xlu0 %365
        %v367 = vrcp.pop 128.0
        %v368 = vmul.f32 %v336, %v367
        %v369 = vmul.f32 %v338, %v367
        %v370 = vmul.f32 %v340, %v367
        %v371 = vmul.f32 %v342, %v367
        %v372 = vmul.f32 %v344, %v367
        %v373 = vmul.f32 %v346, %v367
        %v374 = vmul.f32 %v348, %v367
        %v375 = vmul.f32 %v350, %v367
        %v376 = vmul.f32 %v352, %v367
        %v377 = vmul.f32 %v354, %v367
        %v378 = vmul.f32 %v356, %v367
        %v379 = vmul.f32 %v358, %v367
        %v380 = vmul.f32 %v360, %v367
        %v381 = vmul.f32 %v362, %v367
        %v382 = vmul.f32 %v364, %v367
        %v383 = vmul.f32 %v366, %v367
        %v384 = vsub.f32 %v319, %v368
        %v385 = vsub.f32 %v320, %v369
        %v386 = vsub.f32 %v321, %v370
        %v387 = vsub.f32 %v322, %v371
        %v388 = vsub.f32 %v323, %v372
        %v389 = vsub.f32 %v324, %v373
        %v390 = vsub.f32 %v325, %v374
        %v391 = vsub.f32 %v326, %v375
        %v392 = vsub.f32 %v327, %v376
        %v393 = vsub.f32 %v328, %v377
        %v394 = vsub.f32 %v329, %v378
        %v395 = vsub.f32 %v330, %v379
        %v396 = vsub.f32 %v331, %v380
        %v397 = vsub.f32 %v332, %v381
        %v398 = vsub.f32 %v333, %v382
        %v399 = vsub.f32 %v334, %v383
        %v400 = vmul.f32 %v384, %v384
        %v401 = vmul.f32 %v385, %v385
        %v402 = vmul.f32 %v386, %v386
        %v403 = vmul.f32 %v387, %v387
        %v404 = vmul.f32 %v388, %v388
        %v405 = vmul.f32 %v389, %v389
        %v406 = vmul.f32 %v390, %v390
        %v407 = vmul.f32 %v391, %v391
        %v408 = vmul.f32 %v392, %v392
        %v409 = vmul.f32 %v393, %v393
        %v410 = vmul.f32 %v394, %v394
        %v411 = vmul.f32 %v395, %v395
        %v412 = vmul.f32 %v396, %v396
        %v413 = vmul.f32 %v397, %v397
        %v414 = vmul.f32 %v398, %v398
        %v415 = vmul.f32 %v399, %v399
        %416 = vadd.xlane.f32.xlu0 %v400
        %v417 = vpop.xlane.xlu0 %416
        %418 = vadd.xlane.f32.xlu0 %v401
        %v419 = vpop.xlane.xlu0 %418
        %420 = vadd.xlane.f32.xlu0 %v402
        %v421 = vpop.xlane.xlu0 %420
        %422 = vadd.xlane.f32.xlu0 %v403
        %v423 = vpop.xlane.xlu0 %422
        %424 = vadd.xlane.f32.xlu0 %v404
        %v425 = vpop.xlane.xlu0 %424
        %426 = vadd.xlane.f32.xlu0 %v405
        %v427 = vpop.xlane.xlu0 %426
        %428 = vadd.xlane.f32.xlu0 %v406
        %v429 = vpop.xlane.xlu0 %428
        %430 = vadd.xlane.f32.xlu0 %v407
        %v431 = vpop.xlane.xlu0 %430
        %432 = vadd.xlane.f32.xlu0 %v408
        %v433 = vpop.xlane.xlu0 %432
        %434 = vadd.xlane.f32.xlu0 %v409
        %v435 = vpop.xlane.xlu0 %434
        %436 = vadd.xlane.f32.xlu0 %v410
        %v437 = vpop.xlane.xlu0 %436
        %438 = vadd.xlane.f32.xlu0 %v411
        %v439 = vpop.xlane.xlu0 %438
        %440 = vadd.xlane.f32.xlu0 %v412
        %v441 = vpop.xlane.xlu0 %440
        %442 = vadd.xlane.f32.xlu0 %v413
        %v443 = vpop.xlane.xlu0 %442
        %444 = vadd.xlane.f32.xlu0 %v414
        %v445 = vpop.xlane.xlu0 %444
        %446 = vadd.xlane.f32.xlu0 %v415
        %v447 = vpop.xlane.xlu0 %446
        %v448 = vmul.f32 %v417, %v367
        %v449 = vmul.f32 %v419, %v367
        %v450 = vmul.f32 %v421, %v367
        %v451 = vmul.f32 %v423, %v367
        %v452 = vmul.f32 %v425, %v367
        %v453 = vmul.f32 %v427, %v367
        %v454 = vmul.f32 %v429, %v367
        %v455 = vmul.f32 %v431, %v367
        %v456 = vmul.f32 %v433, %v367
        %v457 = vmul.f32 %v435, %v367
        %v458 = vmul.f32 %v437, %v367
        %v459 = vmul.f32 %v439, %v367
        %v460 = vmul.f32 %v441, %v367
        %v461 = vmul.f32 %v443, %v367
        %v462 = vmul.f32 %v445, %v367
        %v463 = vmul.f32 %v447, %v367
        %v464 = vadd.f32 %v448, 1e-05
        %v465 = vadd.f32 %v449, 1e-05
        %v466 = vadd.f32 %v450, 1e-05
        %v467 = vadd.f32 %v451, 1e-05
        %v468 = vadd.f32 %v452, 1e-05
        %v469 = vadd.f32 %v453, 1e-05
        %v470 = vadd.f32 %v454, 1e-05
        %v471 = vadd.f32 %v455, 1e-05
        %v472 = vadd.f32 %v456, 1e-05
        %v473 = vadd.f32 %v457, 1e-05
        %v474 = vadd.f32 %v458, 1e-05
        %v475 = vadd.f32 %v459, 1e-05
        %v476 = vadd.f32 %v460, 1e-05
        %v477 = vadd.f32 %v461, 1e-05
        %v478 = vadd.f32 %v462, 1e-05
        %v479 = vadd.f32 %v463, 1e-05
        %v480 = vrsqrt.pop %v464
        %v481 = vrsqrt.pop %v465
        %v482 = vrsqrt.pop %v466
        %v483 = vrsqrt.pop %v467
        %v484 = vrsqrt.pop %v468
        %v485 = vrsqrt.pop %v469
        %v486 = vrsqrt.pop %v470
        %v487 = vrsqrt.pop %v471
        %v488 = vrsqrt.pop %v472
        %v489 = vrsqrt.pop %v473
        %v490 = vrsqrt.pop %v474
        %v491 = vrsqrt.pop %v475
        %v492 = vrsqrt.pop %v476
        %v493 = vrsqrt.pop %v477
        %v494 = vrsqrt.pop %v478
        %v495 = vrsqrt.pop %v479
        %v496 = vmul.f32 %v384, %v480
        %v497 = vmul.f32 %v385, %v481
        %v498 = vmul.f32 %v386, %v482
        %v499 = vmul.f32 %v387, %v483
        %v500 = vmul.f32 %v388, %v484
        %v501 = vmul.f32 %v389, %v485
        %v502 = vmul.f32 %v390, %v486
        %v503 = vmul.f32 %v391, %v487
        %v504 = vmul.f32 %v392, %v488
        %v505 = vmul.f32 %v393, %v489
        %v506 = vmul.f32 %v394, %v490
        %v507 = vmul.f32 %v395, %v491
        %v508 = vmul.f32 %v396, %v492
        %v509 = vmul.f32 %v397, %v493
        %v510 = vmul.f32 %v398, %v494
        %v511 = vmul.f32 %v399, %v495
        %v512 = vld [vmem:[%s2] sm:$0x1]
        %v514 = vlaneseq
        %v515 = vshrl.u32 %v514, 7
        %v516 = vsub.s32 0, %v515
        %v517 = vrot.slane %v512, %v516
        %v519 = vmul.f32 %v496, %v517
        %v520 = vmul.f32 %v497, %v517
        %v521 = vmul.f32 %v498, %v517
        %v522 = vmul.f32 %v499, %v517
        %v523 = vmul.f32 %v500, %v517
        %v524 = vmul.f32 %v501, %v517
        %v525 = vmul.f32 %v502, %v517
        %v526 = vmul.f32 %v503, %v517
        %v527 = vmul.f32 %v504, %v517
        %v528 = vmul.f32 %v505, %v517
        %v529 = vmul.f32 %v506, %v517
        %v530 = vmul.f32 %v507, %v517
        %v531 = vmul.f32 %v508, %v517
        %v532 = vmul.f32 %v509, %v517
        %v533 = vmul.f32 %v510, %v517
        %v534 = vmul.f32 %v511, %v517
        %v535 = vld [vmem:[%s3] sm:$0x1]
        %v537 = vlaneseq
        %v538 = vshrl.u32 %v537, 7
        %v539 = vsub.s32 0, %v538
        %v540 = vrot.slane %v535, %v539
        %v542 = vadd.f32 %v519, %v540
        %v543 = vadd.f32 %v520, %v540
        %v544 = vadd.f32 %v521, %v540
        %v545 = vadd.f32 %v522, %v540
        %v546 = vadd.f32 %v523, %v540
        %v547 = vadd.f32 %v524, %v540
        %v548 = vadd.f32 %v525, %v540
        %v549 = vadd.f32 %v526, %v540
        %v550 = vadd.f32 %v527, %v540
        %v551 = vadd.f32 %v528, %v540
        %v552 = vadd.f32 %v529, %v540
        %v553 = vadd.f32 %v530, %v540
        %v554 = vadd.f32 %v531, %v540
        %v555 = vadd.f32 %v532, %v540
        %v556 = vadd.f32 %v533, %v540
        %v557 = vadd.f32 %v534, %v540
        %558 = vst [vmem:[%s127] sm:$0xff] %v542
        %559 = vst [vmem:[%s127 + $0x8] sm:$0xff] %v543
        %560 = vst [vmem:[%s127 + $0x10] sm:$0xff] %v544
        %561 = vst [vmem:[%s127 + $0x18] sm:$0xff] %v545
        %562 = vst [vmem:[%s127 + $0x20] sm:$0xff] %v546
        %563 = vst [vmem:[%s127 + $0x28] sm:$0xff] %v547
        %564 = vst [vmem:[%s127 + $0x30] sm:$0xff] %v548
        %565 = vst [vmem:[%s127 + $0x38] sm:$0xff] %v549
        %566 = vst [vmem:[%s127 + $0x40] sm:$0xff] %v550
        %567 = vst [vmem:[%s127 + $0x48] sm:$0xff] %v551
        %568 = vst [vmem:[%s127 + $0x50] sm:$0xff] %v552
        %569 = vst [vmem:[%s127 + $0x58] sm:$0xff] %v553
        %570 = vst [vmem:[%s127 + $0x60] sm:$0xff] %v554
        %571 = vst [vmem:[%s127 + $0x68] sm:$0xff] %v555
        %572 = vst [vmem:[%s127 + $0x70] sm:$0xff] %v556
        %573 = vst [vmem:[%s127 + $0x78] sm:$0xff] %v557
        %s574 = sand.u32 %s72, 1
        %s575 = scalar_lea.sflag [#allocation7], %s574
        %s576 = sand.u32 %s72, 1
        %s577 = smul.addr %s576, 128
        %s578 = scalar_lea.vmem [#allocation6], %s577
        // Predicated region
        $region76: #{tpu_custom_call.1} parent=27 // pred_check
          %p579 = pneg %p82
        $region77: #{tpu_custom_call.1} parent=27 // pred_check_branch
          %581 = sbr.rel (%p579) target = $region79
        $region78: #{tpu_custom_call.1} parent=27 // pred_region
          %s582 = smul.u32 16, %s22
          %s584 = ssub.s32 2048, 2048
          %585 = vsyncadd %s575, %s584
          %s586 = smul.addr %s582, 128
          %s587 = scalar_lea.hbm %s4, %s586
          %s588 = sshll.u32 %s578, 4
          %s589 = int_to_ptr.vmem [resolvable:$true] %s588
          %594 = dma.vmem_to_hbm [thread:$0]  %s589, 2048, %s587, %s575, 128, 128, 8
        $region79: #{tpu_custom_call.1} parent=27 // pred_fallthru
          _
      $region28: #{tpu_custom_call.1} parent=5 // pred_fallthru
        _
      %p595 = scmp.le.s32.totalorder 2, %s17
      // Predicated region
      $region80: #{tpu_custom_call.1} parent=5 // pred_check
        %p596 = pneg %p595
      $region81: #{tpu_custom_call.1} parent=5 // pred_check_branch
        %598 = sbr.rel (%p596) target = $region83
      $region82: #{tpu_custom_call.1} parent=5 // pred_region
        %s599 = ssub.s32 %s17, 2
        // Predicated region
        $region84: #{tpu_custom_call.1} parent=82 // pred_check
          %p600 = pneg %p88
        $region85: #{tpu_custom_call.1} parent=82 // pred_check_branch
          %602 = sbr.rel (%p600) target = $region87
        $region86: #{tpu_custom_call.1} parent=82 // pred_region
          %s603 = sand.u32 %s73, 1
          %s604 = scalar_lea.sflag [#allocation7], %s603
          %s605 = sand.u32 %s73, 1
          %s606 = smul.addr %s605, 128
          %s607 = scalar_lea.vmem [#allocation6], %s606
          %608 = dma.done %s604, 2048
        $region87: #{tpu_custom_call.1} parent=82 // pred_fallthru
          _
      $region83: #{tpu_custom_call.1} parent=5 // pred_fallthru
        _
    $region6: #{tpu_custom_call.1} parent=1 // loop_footer
      %s21 = sadd.s32 1, %s17
    $region7: #{tpu_custom_call.1} parent=1 // loop_footer_branch
      %16 = sbr.rel target = $region3
    $region8: #{tpu_custom_call.1} parent=1 // loop_exit
      _
    %609 = vsyncpa [#allocation7], 1
    %s610 = scalar_lea.sflag [#allocation7], 1
    %611 = vsyncpa %s610, 1
  %612 = vsyncmov [#allocation3]
  %s613 = vpop.sfrf %612
  %p614 = scmp.eq.s32.totalorder %s613, 0
  %p615 = pneg %p614
  %617 = shalt.err (%p615)
  %s618 = scalar_lea.sflag [#allocation3], 1
  %619 = vsyncmov %s618
  %s620 = vpop.sfrf %619
  %p621 = scmp.eq.s32.totalorder %s620, 0
  %p622 = pneg %p621
  %624 = shalt.err (%p622)
  %s625 = scalar_lea.sflag [#allocation3], 2
  %626 = vsyncmov %s625
  %s627 = vpop.sfrf %626
  %p628 = scmp.eq.s32.totalorder %s627, 0
  %p629 = pneg %p628
  %631 = shalt.err (%p629)
  %s632 = scalar_lea.sflag [#allocation3], 3
  %633 = vsyncmov %s632
  %s634 = vpop.sfrf %633
  %p635 = scmp.eq.s32.totalorder %s634, 0
  %p636 = pneg %p635
  %638 = shalt.err (%p636)
  %s639 = scalar_lea.sflag [#allocation3], 4
  %640 = vsyncmov %s639
  %s641 = vpop.sfrf %640
  %p642 = scmp.eq.s32.totalorder %s641, 0
  %p643 = pneg %p642
  %645 = shalt.err (%p643)
  %s646 = scalar_lea.sflag [#allocation3], 5
  %647 = vsyncmov %s646
  %s648 = vpop.sfrf %647
  %p649 = scmp.eq.s32.totalorder %s648, 0
  %p650 = pneg %p649
  %652 = shalt.err (%p650)
  %s653 = scalar_lea.sflag [#allocation3], 6
  %654 = vsyncmov %s653
  %s655 = vpop.sfrf %654
  %p656 = scmp.eq.s32.totalorder %s655, 0
  %p657 = pneg %p656
  %659 = shalt.err (%p657)
  %s660 = scalar_lea.sflag [#allocation3], 7
  %661 = vsyncmov %s660
  %s662 = vpop.sfrf %661
  %p663 = scmp.eq.s32.totalorder %s662, 0
  %p664 = pneg %p663
  %666 = shalt.err (%p664)

</llo_original>
